<compile_context>
chip_gen: v7x
topology: tpu7x:2x2x1
jax: 0.10.0
libtpu: 0.0.40
codegen_flags: <defaults>
</compile_context>

<pallas_src>
import functools

import jax
import jax.numpy as jnp
from jax.experimental import pallas as pl
from jax.experimental.pallas import tpu as pltpu

_LANE = 128
_SUBLANE = 8


def _weight_dice_kernel(logits_ref, targets_ref, t_out, tp_out, u_out, *,
                        rows_total, tile_r, tiles_per_shard, sub_acc, need_mask):
    s = pl.program_id(0)    # shard (parallel -> both TCs on v7x)
    n = pl.program_id(1)    # batch element
    ti = pl.program_id(2)   # row-tile within this shard

    # The per-shard output blocks are the accumulators (resident across n, ti).
    @pl.when(jnp.logical_and(n == 0, ti == 0))
    def _():
        t_out[...] = jnp.zeros_like(t_out)
        tp_out[...] = jnp.zeros_like(tp_out)
        u_out[...] = jnp.zeros_like(u_out)

    x = logits_ref[...].astype(jnp.float32)     # (C, tile_r, 128)
    t = targets_ref[...].astype(jnp.float32)    # (C, tile_r, 128)

    # sigmoid: exp + reciprocal both run on the EUP slot, keeping VALU free
    # for the accumulation adds/multiplies.
    probs = pl.reciprocal(1.0 + jnp.exp(-x), approx=True)

    if need_mask:
        # Rows past the true extent (tail tile / over-covered shard) contain
        # unspecified boundary-block data; zero them before accumulating.
        row_start = (s * tiles_per_shard + ti) * tile_r
        rows = row_start + jax.lax.broadcasted_iota(jnp.int32, (1, tile_r, 1), 1)
        valid = rows < rows_total
        t = jnp.where(valid, t, 0.0)
        probs = jnp.where(valid, probs, 0.0)

    c, tr, lane = x.shape
    if sub_acc == _SUBLANE:
        # Fold tile rows into a (C, 8, 128) vreg-shaped partial with pure VPU
        # adds (vreg-aligned reshape). The cross-lane/sublane reduction happens
        # only once, outside the kernel.
        def fold(v):
            return v.reshape(c, tr // _SUBLANE, _SUBLANE, lane).sum(axis=1)
    else:
        # Tiny-R fallback (tile_r not a multiple of 8): single sublane reduce.
        def fold(v):
            return v.sum(axis=1, keepdims=True)

    t_out[...] += fold(t)              # per-channel sum(targets)
    tp_out[...] += fold(t * probs)     # per-channel sum(targets * probs)
    u_out[...] += fold(t + probs)      # per-channel sum(targets + probs)


def weight_dice(logits, targets, *, tile_r=2048, num_shards=2):
    """WeightDice.forward: 2*(sum_c w_c*inter_c + 1) / (sum_c w_c*union_c + 1)."""
    N, C, D, H, W = logits.shape
    assert C == 3, "WeightDice assumes 3 channels (w has length 3)"
    assert targets.shape == logits.shape
    S = D * H * W

    lg = logits.reshape(N, C, S)
    tg = targets.reshape(N, C, S)

    # Lane-dense per-(n, c) layout: (N, C, R, 128). If D*H*W is not a multiple
    # of 128, pad exactly: logits -> -1e9 (sigmoid == 0), targets -> 0, so the
    # padded elements contribute nothing to any of the three sums.
    pad = (-S) % _LANE
    if pad:
        # TODO(synk): this pad is an extra XLA HBM pass; only taken when
        # D*H*W % 128 != 0 (rare for real 3-D segmentation crops).
        lg = jnp.pad(lg, ((0, 0), (0, 0), (0, pad)), constant_values=-1e9)
        tg = jnp.pad(tg, ((0, 0), (0, 0), (0, pad)), constant_values=0)
    R = (S + pad) // _LANE
    lg = lg.reshape(N, C, R, _LANE)
    tg = tg.reshape(N, C, R, _LANE)

    # Row-tile size: big lane/sublane-dense blocks (~3 MiB/input block for f32).
    if R <= tile_r:
        tile_r = R
    else:
        tile_r = max(_SUBLANE, (tile_r // _SUBLANE) * _SUBLANE)
    sub_acc = _SUBLANE if tile_r % _SUBLANE == 0 else 1

    r_tiles = pl.cdiv(R, tile_r)
    num_shards = int(max(1, min(num_shards, r_tiles)))
    tiles_per_shard = pl.cdiv(r_tiles, num_shards)
    need_mask = (num_shards * tiles_per_shard * tile_r) != R

    grid = (num_shards, N, tiles_per_shard)

    def in_map(s, n, ti):
        rt = s * tiles_per_shard + ti
        return (n, 0, jnp.minimum(rt, r_tiles - 1), 0)   # clamp over-covered shards

    def out_map(s, n, ti):
        return (s, 0, 0, 0)

    part_shape = jax.ShapeDtypeStruct((num_shards, C, sub_acc, _LANE), jnp.float32)
    out_spec = pl.BlockSpec((None, C, sub_acc, _LANE), out_map)

    kernel = functools.partial(
        _weight_dice_kernel,
        rows_total=R, tile_r=tile_r, tiles_per_shard=tiles_per_shard,
        sub_acc=sub_acc, need_mask=need_mask)

    part_t, part_tp, part_u = pl.pallas_call(
        kernel,
        out_shape=(part_shape, part_shape, part_shape),
        grid_spec=pltpu.PrefetchScalarGridSpec(
            num_scalar_prefetch=0,
            grid=grid,
            in_specs=[
                pl.BlockSpec((None, C, tile_r, _LANE), in_map),
                pl.BlockSpec((None, C, tile_r, _LANE), in_map),
            ],
            out_specs=(out_spec, out_spec, out_spec),
        ),
        compiler_params=pltpu.CompilerParams(
            dimension_semantics=("parallel", "arbitrary", "arbitrary"),
            vmem_limit_bytes=32 * 1024 * 1024,
        ),
    )(lg, tg)

    # Tiny epilogue in plain JAX on the per-shard partial sums.
    num_sum = jnp.sum(part_t, axis=(0, 2, 3))    # per-channel sum(targets)
    inter_c = jnp.sum(part_tp, axis=(0, 2, 3))   # per-channel sum(t * p)
    union_c = jnp.sum(part_u, axis=(0, 2, 3))    # per-channel sum(t + p)
    total = jnp.sum(num_sum)
    smooth = jnp.float32(1.0)
    # w[i] = 0 if num_sum[i] < 1 else
    #        (0.1*num_sum[i] + num_sum[i-1] + num_sum[i-2] + 1) / (total + 1)
    # (PyTorch negative indexing wraps mod 3 -> jnp.roll.)
    w = (0.1 * num_sum + jnp.roll(num_sum, 1) + jnp.roll(num_sum, 2) + 1.0) / (total + 1.0)
    w = jnp.where(num_sum < 1.0, 0.0, w)
    # TODO(synk): original module prints w; skipped here.
    inter = jnp.sum(w * inter_c)
    union = jnp.sum(w * union_c)
    return 2.0 * (inter + smooth) / (union + smooth)


def _weight_dice_ref(logits, targets):
    """Pure-JAX reference mirroring the PyTorch forward exactly."""
    probs = jax.nn.sigmoid(logits.astype(jnp.float32))
    t = targets.astype(jnp.float32)
    smooth = 1.0
    num_sum = jnp.sum(t, axis=(0, 2, 3, 4))
    total = jnp.sum(num_sum)
    w = []
    for i in range(t.shape[1]):
        val = (0.1 * num_sum[i] + num_sum[i - 1] + num_sum[i - 2] + 1.0) / (total + 1.0)
        w.append(jnp.where(num_sum[i] < 1.0, 0.0, val))
    w = jnp.stack(w)
    inter = jnp.sum(w * jnp.sum(t * probs, axis=(0, 2, 3, 4)))
    union = jnp.sum(w * jnp.sum(t + probs, axis=(0, 2, 3, 4)))
    return 2.0 * (inter + smooth) / (union + smooth)


if __name__ == "__main__":
    def make_case(key, shape, logits_dtype=jnp.float32, targets_dtype=jnp.float32,
                  zero_channel=None):
        k1, k2 = jax.random.split(key)
        logits = jax.random.normal(k1, shape, dtype=jnp.float32).astype(logits_dtype)
        tgt = jax.random.bernoulli(k2, 0.3, shape)
        if zero_channel is not None:
            tgt = tgt.at[:, zero_channel].set(False)
        return logits, tgt.astype(targets_dtype)

    keys = jax.random.split(jax.random.PRNGKey(0), 3)
    cases = [
        # 1) basic f32 case: N=2, C=3, D=H=W=8
        (make_case(keys[0], (2, 3, 8, 8, 8)), {}),
        # 2) exercises sharding + tail masking + vreg-shaped fold (tile_r < R)
        (make_case(keys[1], (1, 3, 4, 8, 128)), dict(tile_r=24, num_shards=2)),
        # 3) narrow dtypes (bf16 logits, int8 targets) + empty channel (w=0 path)
        (make_case(keys[2], (1, 3, 2, 16, 128), jnp.bfloat16, jnp.int8,
                   zero_channel=1), {}),
    ]

    for (logits, targets), kwargs in cases:
        out = jax.block_until_ready(weight_dice(logits, targets, **kwargs))
        ref = _weight_dice_ref(logits, targets)
        # 2e-3 tolerance: kernel uses the EUP approximate reciprocal for sigmoid.
        assert jnp.allclose(out, ref, rtol=2e-3, atol=2e-3), (logits.shape, out, ref)

    print("KERNEL_OK")
</pallas_src>

<mosaic_0001>
module attributes {stable_mosaic.version = 11 : i64} {
  func.func @_weight_dice_kernel(%arg0: i32, %arg1: i32, %arg2: i32, %arg3: memref<1x3x4x128xf32, #tpu.memory_space<vmem>>, %arg4: memref<1x3x4x128xf32, #tpu.memory_space<vmem>>, %arg5: memref<1x3x1x128xf32, #tpu.memory_space<vmem>>, %arg6: memref<1x3x1x128xf32, #tpu.memory_space<vmem>>, %arg7: memref<1x3x1x128xf32, #tpu.memory_space<vmem>>) attributes {dimension_semantics = [#tpu.dimension_semantics<parallel>, #tpu.dimension_semantics<arbitrary>, #tpu.dimension_semantics<arbitrary>], iteration_bounds = array<i64: 1, 2, 1>, scalar_prefetch = 0 : i64, scratch_operands = 0 : i64, tpu.core_type = #tpu.core_type<tc>, window_params = [{transform_indices = @transform_0, window_bounds = array<i64: 1, 3, 4, 128>}, {transform_indices = @transform_1, window_bounds = array<i64: 1, 3, 4, 128>}, {transform_indices = @transform_2, window_bounds = array<i64: 1, 3, 1, 128>}, {transform_indices = @transform_3, window_bounds = array<i64: 1, 3, 1, 128>}, {transform_indices = @transform_4, window_bounds = array<i64: 1, 3, 1, 128>}]} {
    %c0_i32 = arith.constant 0 : i32
    %0 = arith.cmpi eq, %arg1, %c0_i32 : i32
    %c0_i32_0 = arith.constant 0 : i32
    %1 = arith.cmpi eq, %arg2, %c0_i32_0 : i32
    %2 = arith.andi %0, %1 : i1
    %3 = arith.extui %2 : i1 to i32
    %c0_i32_1 = arith.constant 0 : i32
    %4 = arith.cmpi ne, %3, %c0_i32_1 : i32
    scf.if %4 {
      %cst_37 = arith.constant 0.000000e+00 : f32
      %41 = vector.broadcast %cst_37 : f32 to vector<3x1x128xf32>
      %c0_38 = arith.constant 0 : index
      %c0_39 = arith.constant 0 : index
      %c0_40 = arith.constant 0 : index
      %c0_41 = arith.constant 0 : index
      %42 = vector.load %arg5[%c0_38, %c0_39, %c0_40, %c0_41] : memref<1x3x1x128xf32, #tpu.memory_space<vmem>>, vector<1x3x1x128xf32>
      %43 = vector.shape_cast %42 : vector<1x3x1x128xf32> to vector<3x1x128xf32>
      %44 = vector.shape_cast %41 : vector<3x1x128xf32> to vector<1x3x1x128xf32>
      tpu.vector_store %arg5[%c0_38, %c0_39, %c0_40, %c0_41], %44 {strides = array<i32>} : memref<1x3x1x128xf32, #tpu.memory_space<vmem>>, vector<1x3x1x128xf32>,
      %cst_42 = arith.constant 0.000000e+00 : f32
      %45 = vector.broadcast %cst_42 : f32 to vector<3x1x128xf32>
      %c0_43 = arith.constant 0 : index
      %c0_44 = arith.constant 0 : index
      %c0_45 = arith.constant 0 : index
      %c0_46 = arith.constant 0 : index
      %46 = vector.load %arg6[%c0_43, %c0_44, %c0_45, %c0_46] : memref<1x3x1x128xf32, #tpu.memory_space<vmem>>, vector<1x3x1x128xf32>
      %47 = vector.shape_cast %46 : vector<1x3x1x128xf32> to vector<3x1x128xf32>
      %48 = vector.shape_cast %45 : vector<3x1x128xf32> to vector<1x3x1x128xf32>
      tpu.vector_store %arg6[%c0_43, %c0_44, %c0_45, %c0_46], %48 {strides = array<i32>} : memref<1x3x1x128xf32, #tpu.memory_space<vmem>>, vector<1x3x1x128xf32>,
      %cst_47 = arith.constant 0.000000e+00 : f32
      %49 = vector.broadcast %cst_47 : f32 to vector<3x1x128xf32>
      %c0_48 = arith.constant 0 : index
      %c0_49 = arith.constant 0 : index
      %c0_50 = arith.constant 0 : index
      %c0_51 = arith.constant 0 : index
      %50 = vector.load %arg7[%c0_48, %c0_49, %c0_50, %c0_51] : memref<1x3x1x128xf32, #tpu.memory_space<vmem>>, vector<1x3x1x128xf32>
      %51 = vector.shape_cast %50 : vector<1x3x1x128xf32> to vector<3x1x128xf32>
      %52 = vector.shape_cast %49 : vector<3x1x128xf32> to vector<1x3x1x128xf32>
      tpu.vector_store %arg7[%c0_48, %c0_49, %c0_50, %c0_51], %52 {strides = array<i32>} : memref<1x3x1x128xf32, #tpu.memory_space<vmem>>, vector<1x3x1x128xf32>,
    } else {
    }
    %c0 = arith.constant 0 : index
    %c0_2 = arith.constant 0 : index
    %c0_3 = arith.constant 0 : index
    %c0_4 = arith.constant 0 : index
    %5 = vector.load %arg3[%c0, %c0_2, %c0_3, %c0_4] : memref<1x3x4x128xf32, #tpu.memory_space<vmem>>, vector<1x3x4x128xf32>
    %6 = vector.shape_cast %5 : vector<1x3x4x128xf32> to vector<3x4x128xf32>
    %c0_5 = arith.constant 0 : index
    %c0_6 = arith.constant 0 : index
    %c0_7 = arith.constant 0 : index
    %c0_8 = arith.constant 0 : index
    %7 = vector.load %arg4[%c0_5, %c0_6, %c0_7, %c0_8] : memref<1x3x4x128xf32, #tpu.memory_space<vmem>>, vector<1x3x4x128xf32>
    %8 = vector.shape_cast %7 : vector<1x3x4x128xf32> to vector<3x4x128xf32>
    %cst = arith.constant 0.000000e+00 : f32
    %9 = vector.broadcast %cst : f32 to vector<3x4x128xf32>
    %10 = arith.subf %9, %6 : vector<3x4x128xf32>
    %11 = math.exp %10 : vector<3x4x128xf32>
    %cst_9 = arith.constant 1.000000e+00 : f32
    %12 = vector.broadcast %cst_9 : f32 to vector<3x4x128xf32>
    %13 = arith.addf %12, %11 : vector<3x4x128xf32>
    %14 = tpu.reciprocal %13 {approx = true} : vector<3x4x128xf32> -> vector<3x4x128xf32>
    %c0_10 = arith.constant 0 : index
    %c0_11 = arith.constant 0 : index
    %c0_12 = arith.constant 0 : index
    %c0_13 = arith.constant 0 : index
    %15 = vector.load %arg5[%c0_10, %c0_11, %c0_12, %c0_13] : memref<1x3x1x128xf32, #tpu.memory_space<vmem>>, vector<1x3x1x128xf32>
    %16 = vector.shape_cast %15 : vector<1x3x1x128xf32> to vector<3x1x128xf32>
    %cst_14 = arith.constant dense<0.000000e+00> : vector<3x128xf32>
    %17 = vector.multi_reduction <add>, %8, %cst_14 [1] : vector<3x4x128xf32> to vector<3x128xf32>
    %18 = vector.shape_cast %17 : vector<3x128xf32> to vector<3x1x128xf32>
    %19 = arith.addf %16, %18 : vector<3x1x128xf32>
    %c0_15 = arith.constant 0 : index
    %c0_16 = arith.constant 0 : index
    %c0_17 = arith.constant 0 : index
    %c0_18 = arith.constant 0 : index
    %20 = vector.load %arg5[%c0_15, %c0_16, %c0_17, %c0_18] : memref<1x3x1x128xf32, #tpu.memory_space<vmem>>, vector<1x3x1x128xf32>
    %21 = vector.shape_cast %20 : vector<1x3x1x128xf32> to vector<3x1x128xf32>
    %22 = vector.shape_cast %19 : vector<3x1x128xf32> to vector<1x3x1x128xf32>
    tpu.vector_store %arg5[%c0_15, %c0_16, %c0_17, %c0_18], %22 {strides = array<i32>} : memref<1x3x1x128xf32, #tpu.memory_space<vmem>>, vector<1x3x1x128xf32>,
    %c0_19 = arith.constant 0 : index
    %c0_20 = arith.constant 0 : index
    %c0_21 = arith.constant 0 : index
    %c0_22 = arith.constant 0 : index
    %23 = vector.load %arg6[%c0_19, %c0_20, %c0_21, %c0_22] : memref<1x3x1x128xf32, #tpu.memory_space<vmem>>, vector<1x3x1x128xf32>
    %24 = vector.shape_cast %23 : vector<1x3x1x128xf32> to vector<3x1x128xf32>
    %25 = arith.mulf %8, %14 : vector<3x4x128xf32>
    %cst_23 = arith.constant dense<0.000000e+00> : vector<3x128xf32>
    %26 = vector.multi_reduction <add>, %25, %cst_23 [1] : vector<3x4x128xf32> to vector<3x128xf32>
    %27 = vector.shape_cast %26 : vector<3x128xf32> to vector<3x1x128xf32>
    %28 = arith.addf %24, %27 : vector<3x1x128xf32>
    %c0_24 = arith.constant 0 : index
    %c0_25 = arith.constant 0 : index
    %c0_26 = arith.constant 0 : index
    %c0_27 = arith.constant 0 : index
    %29 = vector.load %arg6[%c0_24, %c0_25, %c0_26, %c0_27] : memref<1x3x1x128xf32, #tpu.memory_space<vmem>>, vector<1x3x1x128xf32>
    %30 = vector.shape_cast %29 : vector<1x3x1x128xf32> to vector<3x1x128xf32>
    %31 = vector.shape_cast %28 : vector<3x1x128xf32> to vector<1x3x1x128xf32>
    tpu.vector_store %arg6[%c0_24, %c0_25, %c0_26, %c0_27], %31 {strides = array<i32>} : memref<1x3x1x128xf32, #tpu.memory_space<vmem>>, vector<1x3x1x128xf32>,
    %c0_28 = arith.constant 0 : index
    %c0_29 = arith.constant 0 : index
    %c0_30 = arith.constant 0 : index
    %c0_31 = arith.constant 0 : index
    %32 = vector.load %arg7[%c0_28, %c0_29, %c0_30, %c0_31] : memref<1x3x1x128xf32, #tpu.memory_space<vmem>>, vector<1x3x1x128xf32>
    %33 = vector.shape_cast %32 : vector<1x3x1x128xf32> to vector<3x1x128xf32>
    %34 = arith.addf %8, %14 : vector<3x4x128xf32>
    %cst_32 = arith.constant dense<0.000000e+00> : vector<3x128xf32>
    %35 = vector.multi_reduction <add>, %34, %cst_32 [1] : vector<3x4x128xf32> to vector<3x128xf32>
    %36 = vector.shape_cast %35 : vector<3x128xf32> to vector<3x1x128xf32>
    %37 = arith.addf %33, %36 : vector<3x1x128xf32>
    %c0_33 = arith.constant 0 : index
    %c0_34 = arith.constant 0 : index
    %c0_35 = arith.constant 0 : index
    %c0_36 = arith.constant 0 : index
    %38 = vector.load %arg7[%c0_33, %c0_34, %c0_35, %c0_36] : memref<1x3x1x128xf32, #tpu.memory_space<vmem>>, vector<1x3x1x128xf32>
    %39 = vector.shape_cast %38 : vector<1x3x1x128xf32> to vector<3x1x128xf32>
    %40 = vector.shape_cast %37 : vector<3x1x128xf32> to vector<1x3x1x128xf32>
    tpu.vector_store %arg7[%c0_33, %c0_34, %c0_35, %c0_36], %40 {strides = array<i32>} : memref<1x3x1x128xf32, #tpu.memory_space<vmem>>, vector<1x3x1x128xf32>,
    return
  }
  func.func @transform_0(%arg0: i32, %arg1: i32, %arg2: i32) -> (i32, i32, i32, i32) {
    %c1_i32 = arith.constant 1 : i32
    %0 = arith.muli %arg0, %c1_i32 : i32
    %1 = arith.addi %0, %arg2 : i32
    %c0_i32 = arith.constant 0 : i32
    %2 = arith.minsi %1, %c0_i32 : i32
    %c0_i32_0 = arith.constant 0 : i32
    %c0_i32_1 = arith.constant 0 : i32
    %c0_i32_2 = arith.constant 0 : i32
    return %arg1, %c0_i32_0, %2, %c0_i32_1 : i32, i32, i32, i32
  }
  func.func @transform_1(%arg0: i32, %arg1: i32, %arg2: i32) -> (i32, i32, i32, i32) {
    %c1_i32 = arith.constant 1 : i32
    %0 = arith.muli %arg0, %c1_i32 : i32
    %1 = arith.addi %0, %arg2 : i32
    %c0_i32 = arith.constant 0 : i32
    %2 = arith.minsi %1, %c0_i32 : i32
    %c0_i32_0 = arith.constant 0 : i32
    %c0_i32_1 = arith.constant 0 : i32
    %c0_i32_2 = arith.constant 0 : i32
    return %arg1, %c0_i32_0, %2, %c0_i32_1 : i32, i32, i32, i32
  }
  func.func @transform_2(%arg0: i32, %arg1: i32, %arg2: i32) -> (i32, i32, i32, i32) {
    %c0_i32 = arith.constant 0 : i32
    %c0_i32_0 = arith.constant 0 : i32
    %c0_i32_1 = arith.constant 0 : i32
    %c0_i32_2 = arith.constant 0 : i32
    return %arg0, %c0_i32, %c0_i32_0, %c0_i32_1 : i32, i32, i32, i32
  }
  func.func @transform_3(%arg0: i32, %arg1: i32, %arg2: i32) -> (i32, i32, i32, i32) {
    %c0_i32 = arith.constant 0 : i32
    %c0_i32_0 = arith.constant 0 : i32
    %c0_i32_1 = arith.constant 0 : i32
    %c0_i32_2 = arith.constant 0 : i32
    return %arg0, %c0_i32, %c0_i32_0, %c0_i32_1 : i32, i32, i32, i32
  }
  func.func @transform_4(%arg0: i32, %arg1: i32, %arg2: i32) -> (i32, i32, i32, i32) {
    %c0_i32 = arith.constant 0 : i32
    %c0_i32_0 = arith.constant 0 : i32
    %c0_i32_1 = arith.constant 0 : i32
    %c0_i32_2 = arith.constant 0 : i32
    return %arg0, %c0_i32, %c0_i32_0, %c0_i32_1 : i32, i32, i32, i32
  }
}

</mosaic_0001>

<llo_original>
// kernel: tpu_custom_call.1
$region0: #{tpu_custom_call.1}
  #allocation0 [shape = 'u32[]', space=smem, size = 0x4, offset = 0x4, fixed_abs, tag = 'smem constant byte address 0x4 - core index']
  #allocation1 [shape = 'u32[144,128]{1,0:T(1,128)}', space=vmem, size = 0x12000, scoped, tag = 'internal scratch']
  %s0 = inlined_call_operand.hbm [shape: f32[2,3,4,128], index: 0, kind: input, shape index: {}]
  %s1 = inlined_call_operand.hbm [shape: f32[2,3,4,128], index: 1, kind: input, shape index: {}]
  %s2 = inlined_call_operand.hbm [shape: f32[1,3,1,128], index: 2, kind: output, shape index: {0}]
  %s3 = inlined_call_operand.hbm [shape: f32[1,3,1,128], index: 3, kind: output, shape index: {1}]
  %s4 = inlined_call_operand.hbm [shape: f32[1,3,1,128], index: 4, kind: output, shape index: {2}]
  %5 = xla_tuple %s2, %s3, %s4
  %s6 = sld [smem:[#allocation0]]
  $region69: #{tpu_custom_call.1} parent=0
    _
  %s8 = ssub.s32 1, %s6
  %s9 = scalar_select 0, %s8, %s6
  $region1: #{tpu_custom_call.1} parent=0
    #allocation2 [shape = 'u8[12288]{0}', space=vmem, size = 0x3000, scoped, tag = 'input window, operand 0']
    #allocation3 [shape = 's32[2]{0}', space=sflag, size = 0x8, scoped, tag = 'scoped memory for tpu_custom_call.1']
    #allocation4 [shape = 's32[2]{0}', space=sflag, size = 0x8, scoped, tag = 'scoped memory for tpu_custom_call.1']
    #allocation5 [shape = 'u8[12288]{0}', space=vmem, size = 0x3000, scoped, tag = 'input window, operand 1']
    #allocation6 [shape = 's32[2]{0}', space=sflag, size = 0x8, scoped, tag = 'scoped memory for tpu_custom_call.1']
    #allocation7 [shape = 'u8[1536]{0}', space=vmem, size = 0x800, scoped, tag = 'output window, operand 0, single buffered']
    #allocation8 [shape = 'u8[1536]{0}', space=vmem, size = 0x800, scoped, tag = 'output window, operand 1, single buffered']
    #allocation9 [shape = 's32[1]{0}', space=sflag, size = 0x4, scoped, tag = 'scoped memory for tpu_custom_call.1']
    #allocation10 [shape = 'u8[1536]{0}', space=vmem, size = 0x800, scoped, tag = 'output window, operand 2, single buffered']
    %10 = vsyncpa [#allocation3], 0
    %s11 = scalar_lea.sflag [#allocation3], 1
    %12 = vsyncpa %s11, 0
    %13 = vsyncpa [#allocation6], 0
    %s14 = scalar_lea.sflag [#allocation6], 1
    %15 = vsyncpa %s14, 0
    %16 = vsyncpa [#allocation4], 0
    %17 = vsyncpa [#allocation9], 0
    loop: start=0, step=1, limit=4
    $region2: #{tpu_custom_call.1} parent=1 // loop_pre_header
      _
    $region3: #{tpu_custom_call.1} parent=1 // loop_header
      %s19 = sphi 0, %s23
      %p20 = scmp.ge.s32.totalorder %s19, 4
      %s26 = sphi 0, %s45
      %s27 = sphi 0, %s41
      %s28 = sphi 0, %s37
      %s29 = sphi 0, %s26
      %s30 = sphi 0, %s27
      %s31 = sphi 0, %s28
      %s32 = sphi 0, %s29
      %s33 = sphi 0, %s30
      %s34 = sphi 0, %s31
      %s56 = sphi 0, %s58
      %s59 = sphi 0, %s56
      %s60 = sphi 0, %s59
      %s76 = sphi 0, %s60
      %s90 = sphi 0, %s92
      %s93 = sphi 0, %s90
      %s94 = sphi 0, %s93
      %s110 = sphi 0, %s94
      %s116 = sphi 0, %s118
      %s119 = sphi 0, %s116
      %s120 = sphi 0, %s119
      %s136 = sphi 0, %s120
      %s142 = sphi 0, %s144
      %s145 = sphi 0, %s142
      %s146 = sphi 0, %s145
      %s162 = sphi 0, %s146
      %s168 = sphi 0, %s170
      %s171 = sphi 0, %s168
      %s172 = sphi 0, %s171
      %s188 = sphi 0, %s172
    $region4: #{tpu_custom_call.1} parent=1 // loop_header_branch
      %22 = sbr.rel (%p20) target = $region8
    $region5: #{tpu_custom_call.1} parent=1 // loop_body
      %s24 = ssub.s32 %s19, 1
      %s25 = ssub.s32 %s19, 2
      %s35 = sadd.s32 1, %s28
      %p36 = scmp.ge.s32.totalorder %s35, 1
      %s37 = scalar_select %p36, 0, %s35
      %s38 = sadd.s32 1, %s27
      %s39 = scalar_select %p36, %s38, %s27
      %p40 = scmp.ge.s32.totalorder %s39, 2
      %s41 = scalar_select %p40, 0, %s39
      %s42 = sadd.s32 1, %s26
      %s43 = scalar_select %p40, %s42, %s26
      %p44 = scmp.ge.s32.totalorder %s43, 1
      %s45 = scalar_select %p44, 0, %s43
      %s46 = sadd.s32 %s26, %s28
      %p47 = scmp.lt.s32.totalorder %s46, 0
      %s48 = scalar_select %p47, %s46, 0
      %s49 = sadd.s32 %s45, %s37
      %p50 = scmp.lt.s32.totalorder %s49, 0
      %s51 = scalar_select %p50, %s49, 0
      %s52 = ssub.s32 %s27, %s41
      %s53 = ssub.s32 %s48, %s51
      %s54 = sor.u32 %s52, %s53
      %p55 = scmp.eq.s32.totalorder %s54, 0
      %s57 = sadd.s32 %s56, 1
      %s58 = scalar_select %p55, %s56, %s57
      %p61 = pneg %p55
      %p62 = scmp.eq.s32.totalorder %s19, 1
      %p63 = por %p61, %p62
      %p64 = scmp.ne.s32.totalorder %s56, %s59
      %p65 = scmp.eq.s32.totalorder %s19, 0
      %p66 = por %p64, %p65
      %p67 = scmp.ne.s32.totalorder %s56, %s59
      %p68 = scmp.eq.s32.totalorder %s24, 1
      %p69 = por %p67, %p68
      %p70 = scmp.ne.s32.totalorder %s59, %s60
      %p71 = scmp.eq.s32.totalorder %s24, 0
      %p72 = por %p70, %p71
      %p73 = scmp.ne.s32.totalorder %s59, %s60
      %p74 = scmp.eq.s32.totalorder %s25, 1
      %p75 = por %p73, %p74
      %p77 = scmp.ne.s32.totalorder %s60, %s76
      %p78 = scmp.eq.s32.totalorder %s25, 0
      %p79 = por %p77, %p78
      %s80 = sadd.s32 %s26, %s28
      %p81 = scmp.lt.s32.totalorder %s80, 0
      %s82 = scalar_select %p81, %s80, 0
      %s83 = sadd.s32 %s45, %s37
      %p84 = scmp.lt.s32.totalorder %s83, 0
      %s85 = scalar_select %p84, %s83, 0
      %s86 = ssub.s32 %s27, %s41
      %s87 = ssub.s32 %s82, %s85
      %s88 = sor.u32 %s86, %s87
      %p89 = scmp.eq.s32.totalorder %s88, 0
      %s91 = sadd.s32 %s90, 1
      %s92 = scalar_select %p89, %s90, %s91
      %p95 = pneg %p89
      %p96 = scmp.eq.s32.totalorder %s19, 1
      %p97 = por %p95, %p96
      %p98 = scmp.ne.s32.totalorder %s90, %s93
      %p99 = scmp.eq.s32.totalorder %s19, 0
      %p100 = por %p98, %p99
      %p101 = scmp.ne.s32.totalorder %s90, %s93
      %p102 = scmp.eq.s32.totalorder %s24, 1
      %p103 = por %p101, %p102
      %p104 = scmp.ne.s32.totalorder %s93, %s94
      %p105 = scmp.eq.s32.totalorder %s24, 0
      %p106 = por %p104, %p105
      %p107 = scmp.ne.s32.totalorder %s93, %s94
      %p108 = scmp.eq.s32.totalorder %s25, 1
      %p109 = por %p107, %p108
      %p111 = scmp.ne.s32.totalorder %s94, %s110
      %p112 = scmp.eq.s32.totalorder %s25, 0
      %p113 = por %p111, %p112
      %s114 = ssub.s32 %s26, %s45
      %p115 = scmp.eq.s32.totalorder %s114, 0
      %s117 = sadd.s32 %s116, 1
      %s118 = scalar_select %p115, %s116, %s117
      %p121 = pneg %p115
      %p122 = scmp.eq.s32.totalorder %s19, 1
      %p123 = por %p121, %p122
      %p124 = scmp.ne.s32.totalorder %s116, %s119
      %p125 = scmp.eq.s32.totalorder %s19, 0
      %p126 = por %p124, %p125
      %p127 = scmp.ne.s32.totalorder %s116, %s119
      %p128 = scmp.eq.s32.totalorder %s24, 1
      %p129 = por %p127, %p128
      %p130 = scmp.ne.s32.totalorder %s119, %s120
      %p131 = scmp.eq.s32.totalorder %s24, 0
      %p132 = por %p130, %p131
      %p133 = scmp.ne.s32.totalorder %s119, %s120
      %p134 = scmp.eq.s32.totalorder %s25, 1
      %p135 = por %p133, %p134
      %p137 = scmp.ne.s32.totalorder %s120, %s136
      %p138 = scmp.eq.s32.totalorder %s25, 0
      %p139 = por %p137, %p138
      %s140 = ssub.s32 %s26, %s45
      %p141 = scmp.eq.s32.totalorder %s140, 0
      %s143 = sadd.s32 %s142, 1
      %s144 = scalar_select %p141, %s142, %s143
      %p147 = pneg %p141
      %p148 = scmp.eq.s32.totalorder %s19, 1
      %p149 = por %p147, %p148
      %p150 = scmp.ne.s32.totalorder %s142, %s145
      %p151 = scmp.eq.s32.totalorder %s19, 0
      %p152 = por %p150, %p151
      %p153 = scmp.ne.s32.totalorder %s142, %s145
      %p154 = scmp.eq.s32.totalorder %s24, 1
      %p155 = por %p153, %p154
      %p156 = scmp.ne.s32.totalorder %s145, %s146
      %p157 = scmp.eq.s32.totalorder %s24, 0
      %p158 = por %p156, %p157
      %p159 = scmp.ne.s32.totalorder %s145, %s146
      %p160 = scmp.eq.s32.totalorder %s25, 1
      %p161 = por %p159, %p160
      %p163 = scmp.ne.s32.totalorder %s146, %s162
      %p164 = scmp.eq.s32.totalorder %s25, 0
      %p165 = por %p163, %p164
      %s166 = ssub.s32 %s26, %s45
      %p167 = scmp.eq.s32.totalorder %s166, 0
      %s169 = sadd.s32 %s168, 1
      %s170 = scalar_select %p167, %s168, %s169
      %p173 = pneg %p167
      %p174 = scmp.eq.s32.totalorder %s19, 1
      %p175 = por %p173, %p174
      %p176 = scmp.ne.s32.totalorder %s168, %s171
      %p177 = scmp.eq.s32.totalorder %s19, 0
      %p178 = por %p176, %p177
      %p179 = scmp.ne.s32.totalorder %s168, %s171
      %p180 = scmp.eq.s32.totalorder %s24, 1
      %p181 = por %p179, %p180
      %p182 = scmp.ne.s32.totalorder %s171, %s172
      %p183 = scmp.eq.s32.totalorder %s24, 0
      %p184 = por %p182, %p183
      %p185 = scmp.ne.s32.totalorder %s171, %s172
      %p186 = scmp.eq.s32.totalorder %s25, 1
      %p187 = por %p185, %p186
      %p189 = scmp.ne.s32.totalorder %s172, %s188
      %p190 = scmp.eq.s32.totalorder %s25, 0
      %p191 = por %p189, %p190
      %p192 = scmp.le.s32.totalorder 1, %s19
      %p193 = scmp.lt.s32.totalorder %s19, 3
      %p194 = pnand %p192, %p193
      %p195 = pneg %p194
      // Predicated region
      $region9: #{tpu_custom_call.1} parent=5 // pred_check
        _
      $region10: #{tpu_custom_call.1} parent=5 // pred_check_branch
        %197 = sbr.rel (%p194) target = $region12
      $region11: #{tpu_custom_call.1} parent=5 // pred_region
        %s198 = ssub.s32 %s19, 1
      $region12: #{tpu_custom_call.1} parent=5 // pred_fallthru
        _
      %p199 = scmp.lt.s32.totalorder %s19, 2
      // Predicated region
      $region13: #{tpu_custom_call.1} parent=5 // pred_check
        %p200 = pneg %p199
      $region14: #{tpu_custom_call.1} parent=5 // pred_check_branch
        %202 = sbr.rel (%p200) target = $region16
      $region15: #{tpu_custom_call.1} parent=5 // pred_region
        // Predicated region
        $region17: #{tpu_custom_call.1} parent=15 // pred_check
          %p203 = pneg %p66
        $region18: #{tpu_custom_call.1} parent=15 // pred_check_branch
          %205 = sbr.rel (%p203) target = $region20
        $region19: #{tpu_custom_call.1} parent=15 // pred_region
          %s206 = sand.u32 %s56, 1
          %s207 = scalar_lea.sflag [#allocation3], %s206
          %s208 = sand.u32 %s56, 1
          %s209 = smul.addr %s208, 12
          %s210 = scalar_lea.vmem [#allocation2], %s209
          %s211 = sadd.s32 %s26, %s28
          %p212 = scmp.lt.s32.totalorder %s211, 0
          %s213 = scalar_select %p212, %s211, 0
          %s215 = ssub.s32 192, 192
          %216 = vsyncadd %s207, %s215
          %s217 = smul.addr %s27, 3
          %s218 = sadd.s32 %s213, %s217
          %s219 = smul.addr %s218, 64
          %s220 = scalar_lea.hbm %s0, %s219
          %s221 = sshll.u32 %s210, 4
          %s222 = int_to_ptr.vmem [resolvable:$true] %s221
          %227 = dma.hbm_to_vmem [thread:$0]  %s220, 192, %s222, %s207, 64, 64, 4
        $region20: #{tpu_custom_call.1} parent=15 // pred_fallthru
          _
        // Predicated region
        $region21: #{tpu_custom_call.1} parent=15 // pred_check
          %p228 = pneg %p100
        $region22: #{tpu_custom_call.1} parent=15 // pred_check_branch
          %230 = sbr.rel (%p228) target = $region24
        $region23: #{tpu_custom_call.1} parent=15 // pred_region
          %s231 = sand.u32 %s90, 1
          %s232 = scalar_lea.sflag [#allocation6], %s231
          %s233 = sand.u32 %s90, 1
          %s234 = smul.addr %s233, 12
          %s235 = scalar_lea.vmem [#allocation5], %s234
          %s236 = sadd.s32 %s26, %s28
          %p237 = scmp.lt.s32.totalorder %s236, 0
          %s238 = scalar_select %p237, %s236, 0
          %s240 = ssub.s32 192, 192
          %241 = vsyncadd %s232, %s240
          %s242 = smul.addr %s27, 3
          %s243 = sadd.s32 %s238, %s242
          %s244 = smul.addr %s243, 64
          %s245 = scalar_lea.hbm %s1, %s244
          %s246 = sshll.u32 %s235, 4
          %s247 = int_to_ptr.vmem [resolvable:$true] %s246
          %252 = dma.hbm_to_vmem [thread:$0]  %s245, 192, %s247, %s232, 64, 64, 4
        $region24: #{tpu_custom_call.1} parent=15 // pred_fallthru
          _
      $region16: #{tpu_custom_call.1} parent=5 // pred_fallthru
        _
      %p253 = scmp.le.s32.totalorder 1, %s19
      %p254 = scmp.lt.s32.totalorder %s19, 3
      %p255 = pnand %p253, %p254
      %p256 = pneg %p255
      // Predicated region
      $region25: #{tpu_custom_call.1} parent=5 // pred_check
        _
      $region26: #{tpu_custom_call.1} parent=5 // pred_check_branch
        %258 = sbr.rel (%p255) target = $region28
      $region27: #{tpu_custom_call.1} parent=5 // pred_region
        %s259 = ssub.s32 %s19, 1
        %s260 = sand.u32 %s59, 1
        %s261 = scalar_lea.sflag [#allocation3], %s260
        %s262 = sand.u32 %s59, 1
        %s263 = smul.addr %s262, 12
        %s264 = scalar_lea.vmem [#allocation2], %s263
        // Predicated region
        $region29: #{tpu_custom_call.1} parent=27 // pred_check
          %p265 = pneg %p72
        $region30: #{tpu_custom_call.1} parent=27 // pred_check_branch
          %267 = sbr.rel (%p265) target = $region32
        $region31: #{tpu_custom_call.1} parent=27 // pred_region
          %268 = dma.done %s261, 192
        $region32: #{tpu_custom_call.1} parent=27 // pred_fallthru
          _
        %s269 = sand.u32 %s93, 1
        %s270 = scalar_lea.sflag [#allocation6], %s269
        %s271 = sand.u32 %s93, 1
        %s272 = smul.addr %s271, 12
        %s273 = scalar_lea.vmem [#allocation5], %s272
        // Predicated region
        $region33: #{tpu_custom_call.1} parent=27 // pred_check
          %p274 = pneg %p106
        $region34: #{tpu_custom_call.1} parent=27 // pred_check_branch
          %276 = sbr.rel (%p274) target = $region36
        $region35: #{tpu_custom_call.1} parent=27 // pred_region
          %277 = dma.done %s270, 192
        $region36: #{tpu_custom_call.1} parent=27 // pred_fallthru
          _
        %s278 = sand.u32 %s59, 1
        %s279 = scalar_lea.sflag [#allocation3], %s278
        %s280 = sand.u32 %s59, 1
        %s281 = smul.addr %s280, 12
        %s282 = scalar_lea.vmem [#allocation2], %s281
        %p283 = pneg %p72
        %p284 = pneg %p69
        %s285 = sand.u32 %s93, 1
        %s286 = scalar_lea.sflag [#allocation6], %s285
        %s287 = sand.u32 %s93, 1
        %s288 = smul.addr %s287, 12
        %s289 = scalar_lea.vmem [#allocation5], %s288
        %p290 = pneg %p106
        %p291 = pneg %p103
        %p292 = pneg %p132
        %p293 = pneg %p129
        %p294 = pneg %p158
        %p295 = pneg %p155
        %p296 = pneg %p184
        %p297 = pneg %p181
        %s298 = sadd.s32 %s29, %s31
        %p299 = scmp.lt.s32.totalorder %s298, 0
        %s300 = scalar_select %p299, %s298, 0
        %s301 = sadd.s32 %s29, %s31
        %p302 = scmp.lt.s32.totalorder %s301, 0
        %s303 = scalar_select %p302, %s301, 0
        %p304 = scmp.eq.s32.totalorder %s30, 0
        %p305 = scmp.eq.s32.totalorder %s31, 0
        %p306 = pnand %p304, %p305
        %p307 = pneg %p306
        // Predicated region
        $region37: #{tpu_custom_call.1} parent=27 // pred_check
          _
        $region38: #{tpu_custom_call.1} parent=27 // pred_check_branch
          %309 = sbr.rel (%p306) target = $region40
        $region39: #{tpu_custom_call.1} parent=27 // pred_region
          %310 = vst [vmem:[#allocation7] sm:$0x1] 0.0
          %311 = vst [vmem:[#allocation7 + $0x1] sm:$0x1] 0.0
          %312 = vst [vmem:[#allocation7 + $0x2] sm:$0x1] 0.0
          %313 = vst [vmem:[#allocation8] sm:$0x1] 0.0
          %314 = vst [vmem:[#allocation8 + $0x1] sm:$0x1] 0.0
          %315 = vst [vmem:[#allocation8 + $0x2] sm:$0x1] 0.0
          %316 = vst [vmem:[#allocation10] sm:$0x1] 0.0
          %317 = vst [vmem:[#allocation10 + $0x1] sm:$0x1] 0.0
          %318 = vst [vmem:[#allocation10 + $0x2] sm:$0x1] 0.0
        $region40: #{tpu_custom_call.1} parent=27 // pred_fallthru
          _
        %v319 = vld [vmem:[%s264] sm:$0xf]
        %v320 = vld [vmem:[%s264 + $0x4] sm:$0xf]
        %v321 = vld [vmem:[%s264 + $0x8] sm:$0xf]
        %v322 = vld [vmem:[%s273] sm:$0xf]
        %v323 = vld [vmem:[%s273 + $0x4] sm:$0xf]
        %v324 = vld [vmem:[%s273 + $0x8] sm:$0xf]
        %v325 = vsub.f32 0.0, %v319
        %v326 = vsub.f32 0.0, %v320
        %v327 = vsub.f32 0.0, %v321
        %v328 = vmul.f32 %v325, 1.442695
        %v329 = vpow.pop %v328
        %v330 = vmul.f32 %v326, 1.442695
        %v331 = vpow.pop %v330
        %v332 = vmul.f32 %v327, 1.442695
        %v333 = vpow.pop %v332
        %v334 = vadd.f32 %v329, 1.0
        %v335 = vadd.f32 %v331, 1.0
        %v336 = vadd.f32 %v333, 1.0
        %v337 = vrcp.pop %v334
        %v338 = vrcp.pop %v335
        %v339 = vrcp.pop %v336
        %v340 = vld [vmem:[#allocation7] sm:$0x1]
        %v341 = vld [vmem:[#allocation7 + $0x1] sm:$0x1]
        %v342 = vld [vmem:[#allocation7 + $0x2] sm:$0x1]
        %vm343 = vcmask 1043456
        %v344 = vsel %vm343, %v322, 0.0
        %v345 = vrot.slane %v344, 4
        %v346 = vadd.f32 %v344, %v345
        %v347 = vrot.slane %v346, 2
        %v348 = vadd.f32 %v346, %v347
        %v349 = vrot.slane %v348, 1
        %v350 = vadd.f32 %v348, %v349
        %v351 = vsel %vm343, %v323, 0.0
        %v352 = vrot.slane %v351, 4
        %v353 = vadd.f32 %v351, %v352
        %v354 = vrot.slane %v353, 2
        %v355 = vadd.f32 %v353, %v354
        %v356 = vrot.slane %v355, 1
        %v357 = vadd.f32 %v355, %v356
        %v358 = vsel %vm343, %v324, 0.0
        %v359 = vrot.slane %v358, 4
        %v360 = vadd.f32 %v358, %v359
        %v361 = vrot.slane %v360, 2
        %v362 = vadd.f32 %v360, %v361
        %v363 = vrot.slane %v362, 1
        %v364 = vadd.f32 %v362, %v363
        %v365 = vadd.f32 %v340, %v350
        %v366 = vadd.f32 %v341, %v357
        %v367 = vadd.f32 %v342, %v364
        %368 = vst [vmem:[#allocation7] sm:$0x1] %v365
        %369 = vst [vmem:[#allocation7 + $0x1] sm:$0x1] %v366
        %370 = vst [vmem:[#allocation7 + $0x2] sm:$0x1] %v367
        %v371 = vld [vmem:[#allocation8] sm:$0x1]
        %v372 = vld [vmem:[#allocation8 + $0x1] sm:$0x1]
        %v373 = vld [vmem:[#allocation8 + $0x2] sm:$0x1]
        %v374 = vmul.f32 %v322, %v337
        %v375 = vmul.f32 %v323, %v338
        %v376 = vmul.f32 %v324, %v339
        %v377 = vsel %vm343, %v374, 0.0
        %v378 = vrot.slane %v377, 4
        %v379 = vadd.f32 %v377, %v378
        %v380 = vrot.slane %v379, 2
        %v381 = vadd.f32 %v379, %v380
        %v382 = vrot.slane %v381, 1
        %v383 = vadd.f32 %v381, %v382
        %v384 = vsel %vm343, %v375, 0.0
        %v385 = vrot.slane %v384, 4
        %v386 = vadd.f32 %v384, %v385
        %v387 = vrot.slane %v386, 2
        %v388 = vadd.f32 %v386, %v387
        %v389 = vrot.slane %v388, 1
        %v390 = vadd.f32 %v388, %v389
        %v391 = vsel %vm343, %v376, 0.0
        %v392 = vrot.slane %v391, 4
        %v393 = vadd.f32 %v391, %v392
        %v394 = vrot.slane %v393, 2
        %v395 = vadd.f32 %v393, %v394
        %v396 = vrot.slane %v395, 1
        %v397 = vadd.f32 %v395, %v396
        %v398 = vadd.f32 %v371, %v383
        %v399 = vadd.f32 %v372, %v390
        %v400 = vadd.f32 %v373, %v397
        %401 = vst [vmem:[#allocation8] sm:$0x1] %v398
        %402 = vst [vmem:[#allocation8 + $0x1] sm:$0x1] %v399
        %403 = vst [vmem:[#allocation8 + $0x2] sm:$0x1] %v400
        %v404 = vld [vmem:[#allocation10] sm:$0x1]
        %v405 = vld [vmem:[#allocation10 + $0x1] sm:$0x1]
        %v406 = vld [vmem:[#allocation10 + $0x2] sm:$0x1]
        %v407 = vadd.f32 %v322, %v337
        %v408 = vadd.f32 %v323, %v338
        %v409 = vadd.f32 %v324, %v339
        %v410 = vsel %vm343, %v407, 0.0
        %v411 = vrot.slane %v410, 4
        %v412 = vadd.f32 %v410, %v411
        %v413 = vrot.slane %v412, 2
        %v414 = vadd.f32 %v412, %v413
        %v415 = vrot.slane %v414, 1
        %v416 = vadd.f32 %v414, %v415
        %v417 = vsel %vm343, %v408, 0.0
        %v418 = vrot.slane %v417, 4
        %v419 = vadd.f32 %v417, %v418
        %v420 = vrot.slane %v419, 2
        %v421 = vadd.f32 %v419, %v420
        %v422 = vrot.slane %v421, 1
        %v423 = vadd.f32 %v421, %v422
        %v424 = vsel %vm343, %v409, 0.0
        %v425 = vrot.slane %v424, 4
        %v426 = vadd.f32 %v424, %v425
        %v427 = vrot.slane %v426, 2
        %v428 = vadd.f32 %v426, %v427
        %v429 = vrot.slane %v428, 1
        %v430 = vadd.f32 %v428, %v429
        %v431 = vadd.f32 %v404, %v416
        %v432 = vadd.f32 %v405, %v423
        %v433 = vadd.f32 %v406, %v430
        %434 = vst [vmem:[#allocation10] sm:$0x1] %v431
        %435 = vst [vmem:[#allocation10 + $0x1] sm:$0x1] %v432
        %436 = vst [vmem:[#allocation10 + $0x2] sm:$0x1] %v433
        // Predicated region
        $region41: #{tpu_custom_call.1} parent=27 // pred_check
          %p437 = pneg %p129
        $region42: #{tpu_custom_call.1} parent=27 // pred_check_branch
          %439 = sbr.rel (%p437) target = $region44
        $region43: #{tpu_custom_call.1} parent=27 // pred_region
          %s441 = ssub.s32 48, 48
          %442 = vsyncadd [#allocation4], %s441
          %s443 = smul.addr %s29, 3
          %s444 = smul.addr %s443, 16
          %s445 = scalar_lea.hbm %s2, %s444
          %s446 = sshll.u32 [#allocation7], 4
          %s447 = int_to_ptr.vmem [resolvable:$true] %s446
          %452 = dma.vmem_to_hbm [thread:$0]  %s447, 48, %s445, [#allocation4], 16, 16, 1
        $region44: #{tpu_custom_call.1} parent=27 // pred_fallthru
          _
        // Predicated region
        $region45: #{tpu_custom_call.1} parent=27 // pred_check
          %p453 = pneg %p155
        $region46: #{tpu_custom_call.1} parent=27 // pred_check_branch
          %455 = sbr.rel (%p453) target = $region48
        $region47: #{tpu_custom_call.1} parent=27 // pred_region
          %s457 = ssub.s32 48, 48
          %458 = vsyncadd [#allocation9], %s457
          %s459 = smul.addr %s29, 3
          %s460 = smul.addr %s459, 16
          %s461 = scalar_lea.hbm %s3, %s460
          %s462 = sshll.u32 [#allocation8], 4
          %s463 = int_to_ptr.vmem [resolvable:$true] %s462
          %468 = dma.vmem_to_hbm [thread:$0]  %s463, 48, %s461, [#allocation9], 16, 16, 1
        $region48: #{tpu_custom_call.1} parent=27 // pred_fallthru
          _
        // Predicated region
        $region49: #{tpu_custom_call.1} parent=27 // pred_check
          %p469 = pneg %p181
        $region50: #{tpu_custom_call.1} parent=27 // pred_check_branch
          %471 = sbr.rel (%p469) target = $region52
        $region51: #{tpu_custom_call.1} parent=27 // pred_region
          %s473 = ssub.s32 48, 48
          %474 = vsyncadd [#allocation9], %s473
          %s475 = smul.addr %s29, 3
          %s476 = smul.addr %s475, 16
          %s477 = scalar_lea.hbm %s4, %s476
          %s478 = sshll.u32 [#allocation10], 4
          %s479 = int_to_ptr.vmem [resolvable:$true] %s478
          %484 = dma.vmem_to_hbm [thread:$0]  %s479, 48, %s477, [#allocation9], 16, 16, 1
        $region52: #{tpu_custom_call.1} parent=27 // pred_fallthru
          _
        // Predicated region
        $region53: #{tpu_custom_call.1} parent=27 // pred_check
          %p485 = pneg %p129
        $region54: #{tpu_custom_call.1} parent=27 // pred_check_branch
          %487 = sbr.rel (%p485) target = $region56
        $region55: #{tpu_custom_call.1} parent=27 // pred_region
          %488 = dma.done [#allocation4], 48
        $region56: #{tpu_custom_call.1} parent=27 // pred_fallthru
          _
        // Predicated region
        $region57: #{tpu_custom_call.1} parent=27 // pred_check
          %p489 = pneg %p155
        $region58: #{tpu_custom_call.1} parent=27 // pred_check_branch
          %491 = sbr.rel (%p489) target = $region60
        $region59: #{tpu_custom_call.1} parent=27 // pred_region
          %492 = dma.done [#allocation9], 48
        $region60: #{tpu_custom_call.1} parent=27 // pred_fallthru
          _
        // Predicated region
        $region61: #{tpu_custom_call.1} parent=27 // pred_check
          %p493 = pneg %p181
        $region62: #{tpu_custom_call.1} parent=27 // pred_check_branch
          %495 = sbr.rel (%p493) target = $region64
        $region63: #{tpu_custom_call.1} parent=27 // pred_region
          %496 = dma.done [#allocation9], 48
        $region64: #{tpu_custom_call.1} parent=27 // pred_fallthru
          _
      $region28: #{tpu_custom_call.1} parent=5 // pred_fallthru
        _
      %p497 = scmp.le.s32.totalorder 2, %s19
      // Predicated region
      $region65: #{tpu_custom_call.1} parent=5 // pred_check
        %p498 = pneg %p497
      $region66: #{tpu_custom_call.1} parent=5 // pred_check_branch
        %500 = sbr.rel (%p498) target = $region68
      $region67: #{tpu_custom_call.1} parent=5 // pred_region
        %s501 = ssub.s32 %s19, 2
      $region68: #{tpu_custom_call.1} parent=5 // pred_fallthru
        _
    $region6: #{tpu_custom_call.1} parent=1 // loop_footer
      %s23 = sadd.s32 1, %s19
    $region7: #{tpu_custom_call.1} parent=1 // loop_footer_branch
      %18 = sbr.rel target = $region3
    $region8: #{tpu_custom_call.1} parent=1 // loop_exit
      _
    %502 = vsyncpa [#allocation3], 1
    %s503 = scalar_lea.sflag [#allocation3], 1
    %504 = vsyncpa %s503, 1
    %505 = vsyncpa [#allocation6], 1
    %s506 = scalar_lea.sflag [#allocation6], 1
    %507 = vsyncpa %s506, 1
    %508 = vsyncpa [#allocation4], 1
    %s509 = scalar_lea.sflag [#allocation4], 1
    %510 = vsyncpa %s509, 1
    %511 = vsyncpa [#allocation9], 1

</llo_original>
